<compile_context>
chip_gen: v6e
topology: v6e:2x2x1
jax: 0.10.0
libtpu: 0.0.40
codegen_flags: <defaults>
</compile_context>

<pallas_src>
import jax
import jax.numpy as jnp
from jax.experimental import pallas as pl
from jax.experimental.pallas import tpu as pltpu


def _round_up(x, m):
    return (x + m - 1) // m * m


def _cdiv(a, b):
    return -(-a // b)


# ---------------------------------------------------------------------------
# Kernel
# ---------------------------------------------------------------------------
def _actor_kernel(x_ref, w1_ref, b1_ref, w2_ref, b2_ref, w3_ref, b3_ref, mu_ref):
    """Fused MLP: two hidden Linear+ReLU layers and the mu head (bf16 MXU, f32 acc)."""
    x = x_ref[...]                                                     # (TB, in_p) bf16

    h1 = jnp.dot(x, w1_ref[...], preferred_element_type=jnp.float32) + b1_ref[...]
    h1 = jnp.maximum(h1, 0.0).astype(jnp.bfloat16)

    h2 = jnp.dot(h1, w2_ref[...], preferred_element_type=jnp.float32) + b2_ref[...]
    h2 = jnp.maximum(h2, 0.0).astype(jnp.bfloat16)

    mu = jnp.dot(h2, w3_ref[...], preferred_element_type=jnp.float32) + b3_ref[...]
    mu_ref[...] = mu.astype(mu_ref.dtype)


# ---------------------------------------------------------------------------
# Parameter packing (one-time; NOT per forward step)
# ---------------------------------------------------------------------------
def init_actor_params(key, input_dim, hidden_dim, output_dim):
    """Xavier-uniform weights, zero biases, zero log_std (matches Actor.init_weights)."""
    def xavier(k, fan_in, fan_out):
        bound = jnp.sqrt(6.0 / (fan_in + fan_out))
        # stored as [in, out] so the kernel computes x @ W directly
        return jax.random.uniform(k, (fan_in, fan_out), jnp.float32, -bound, bound)

    k1, k2, k3 = jax.random.split(key, 3)
    w1 = xavier(k1, input_dim, hidden_dim)
    b1 = jnp.zeros((1, hidden_dim), jnp.float32)
    w2 = xavier(k2, hidden_dim, hidden_dim)
    b2 = jnp.zeros((1, hidden_dim), jnp.float32)
    w3 = xavier(k3, hidden_dim, output_dim)
    b3 = jnp.zeros((1, output_dim), jnp.float32)
    log_std = jnp.zeros((1, output_dim), jnp.float32)  # nn.Parameter(torch.zeros(output_dim))
    return (w1, b1, w2, b2, w3, b3, log_std)


def pack_actor_params(params):
    """Pad + cast parameters to lane-dense MXU-friendly layouts.

    Call once after init / after each optimizer update — the padded copies are
    reused by every forward call (previously this padding was rebuilt per call
    and dominated the wall clock).
    Zero padding keeps results exact: padded contraction rows/cols contribute 0
    and padded output columns are sliced off outside the kernel.
    """
    w1, b1, w2, b2, w3, b3, log_std = params
    input_dim, hidden_dim = w1.shape
    out_dim = w3.shape[1]
    in_p = _round_up(input_dim, 128)
    hid_p = _round_up(hidden_dim, 128)
    out_p = _round_up(out_dim, 128)
    bf16, f32 = jnp.bfloat16, jnp.float32

    return {
        "w1": jnp.zeros((in_p, hid_p), bf16).at[:input_dim, :hidden_dim].set(w1.astype(bf16)),
        "b1": jnp.zeros((1, hid_p), f32).at[:, :hidden_dim].set(b1.reshape(1, hidden_dim).astype(f32)),
        "w2": jnp.zeros((hid_p, hid_p), bf16).at[:hidden_dim, :hidden_dim].set(w2.astype(bf16)),
        "b2": jnp.zeros((1, hid_p), f32).at[:, :hidden_dim].set(b2.reshape(1, hidden_dim).astype(f32)),
        "w3": jnp.zeros((hid_p, out_p), bf16).at[:hidden_dim, :out_dim].set(w3.astype(bf16)),
        "b3": jnp.zeros((1, out_p), f32).at[:, :out_dim].set(b3.reshape(1, out_dim).astype(f32)),
        "log_std": log_std.reshape(1, out_dim).astype(f32),
    }


# ---------------------------------------------------------------------------
# Batch-tile selection
# ---------------------------------------------------------------------------
def _select_batch_tiling(batch, max_batch_tile=512, min_grid=2):
    """Pick (batch_tile, padded_batch).

    * at least `min_grid` tiles so ("parallel",) can shard across v7x's 2 TCs
    * each tile <= max_batch_tile (drop to 256 only if ld/st slot_util shows spill)
    * 256-aligned tile (full MXU M-pass on v6e/v7x) only when the padding cost
      stays small, otherwise a 16-sublane multiple to minimize last-tile waste.
    """
    num_tiles = max(min_grid, _cdiv(batch, max_batch_tile))
    exact = _cdiv(batch, num_tiles)
    tb16 = _round_up(exact, 16)
    tb256 = _round_up(exact, 256)
    if num_tiles * tb256 <= max(num_tiles * tb16, int(batch * 1.125)):
        tb = tb256
    else:
        tb = tb16
    return tb, num_tiles * tb


# ---------------------------------------------------------------------------
# Forward
# ---------------------------------------------------------------------------
def _small_batch_forward(x_p, w1, b1, w2, b2, w3, b3):
    """Plain fused-jnp path for tiny batches (same bf16/f32 math as the kernel)."""
    h1 = jnp.maximum(jnp.dot(x_p, w1, preferred_element_type=jnp.float32) + b1, 0.0)
    h1 = h1.astype(jnp.bfloat16)
    h2 = jnp.maximum(jnp.dot(h1, w2, preferred_element_type=jnp.float32) + b2, 0.0)
    h2 = h2.astype(jnp.bfloat16)
    return jnp.dot(h2, w3, preferred_element_type=jnp.float32) + b3


def actor_forward(state, packed, *, max_batch_tile=512, min_pallas_batch=64,
                  mu_dtype=jnp.float32):
    """Fused Actor forward on pre-packed params. Returns (mu, std).

    Pass mu_dtype=jnp.bfloat16 for large-batch rollouts to halve mu HBM writeback
    (matters most on v5e's ~0.8 TB/s HBM).
    """
    w1, b1 = packed["w1"], packed["b1"]
    w2, b2 = packed["w2"], packed["b2"]
    w3, b3 = packed["w3"], packed["b3"]
    log_std = packed["log_std"]

    batch, input_dim = state.shape
    in_p, hid_p = w1.shape
    out_p = w3.shape[1]
    out_dim = log_std.shape[-1]

    x = state.astype(jnp.bfloat16)

    if batch < min_pallas_batch:
        # Launch/padding overhead dominates a pallas_call at tiny batch sizes:
        # let XLA fuse dot+bias+relu instead.
        if input_dim != in_p:
            x = jnp.pad(x, ((0, 0), (0, in_p - input_dim)))       # zero fill (exactness)
        mu = _small_batch_forward(x, w1, b1, w2, b2, w3, b3)[:batch, :out_dim]
        mu = mu.astype(mu_dtype)
    else:
        tb, batch_p = _select_batch_tiling(batch, max_batch_tile)
        if input_dim != in_p or batch_p != batch:
            # Single zero-filled copy: feature padding MUST be zero (exact zero-K),
            # batch padded only to the minimal grid multiple chosen above.
            x = jnp.zeros((batch_p, in_p), jnp.bfloat16).at[:batch, :input_dim].set(x)

        # VMEM guard for scaled hidden dims (v7x: 64 MiB physical / 32 MiB scoped
        # default). Constant-index weights don't need double buffering.
        weight_mode = pl.Buffered(1) if hid_p >= 2048 else None
        wbuf = 1 if weight_mode is not None else 2
        mu_itemsize = jnp.dtype(mu_dtype).itemsize
        vmem_est = (
            wbuf * 2 * (in_p * hid_p + hid_p * hid_p + hid_p * out_p)  # bf16 weights
            + wbuf * 4 * (2 * hid_p + out_p)                           # f32 biases
            + 2 * tb * in_p * 2                                        # x (double-buffered)
            + 2 * tb * out_p * mu_itemsize                             # mu (double-buffered)
            + 2 * tb * hid_p * 4                                       # h1/h2 f32 temporaries
        )
        vmem_limit = None
        if vmem_est > 30 * 1024 * 1024:
            # TODO(synk): for hid_p >= ~4096 switch to a K-tiled grid with an
            # accumulator scratch instead of whole-weight residency.
            vmem_limit = min(int(vmem_est * 1.25), 100 * 1024 * 1024)

        def const_spec(shape):
            if weight_mode is None:
                return pl.BlockSpec(shape, lambda i: (0, 0))
            return pl.BlockSpec(shape, lambda i: (0, 0), pipeline_mode=weight_mode)

        grid = (batch_p // tb,)
        mu_p = pl.pallas_call(
            _actor_kernel,
            out_shape=jax.ShapeDtypeStruct((batch_p, out_p), mu_dtype),
            grid=grid,
            in_specs=[
                pl.BlockSpec((tb, in_p), lambda i: (i, 0)),        # state: tiled over batch
                const_spec((in_p, hid_p)),                         # W1: VMEM-resident
                const_spec((1, hid_p)),                            # b1
                const_spec((hid_p, hid_p)),                        # W2
                const_spec((1, hid_p)),                            # b2
                const_spec((hid_p, out_p)),                        # W3
                const_spec((1, out_p)),                            # b3
            ],
            out_specs=pl.BlockSpec((tb, out_p), lambda i: (i, 0)), # mu: lane-dense tile
            compiler_params=pltpu.CompilerParams(
                dimension_semantics=("parallel",),                 # shards batch across TCs (v7x)
                vmem_limit_bytes=vmem_limit,
            ),
        )(x, w1, b1, w2, b2, w3, b3)
        mu = mu_p[:batch, :out_dim]

    # std = exp(log_std) does not depend on the state -> computed outside the kernel.
    std = jnp.broadcast_to(jnp.exp(log_std.reshape(1, out_dim)), (batch, out_dim))
    return mu, std


# ---------------------------------------------------------------------------
# Reference + test
# ---------------------------------------------------------------------------
def _ref_forward(state, params):
    """Pure-JAX reference with the same bf16-operand / f32-accumulate matmuls."""
    w1, b1, w2, b2, w3, b3, log_std = params
    bf = jnp.bfloat16
    h1 = jnp.maximum(
        jnp.dot(state.astype(bf), w1.astype(bf), preferred_element_type=jnp.float32) + b1, 0.0)
    h2 = jnp.maximum(
        jnp.dot(h1.astype(bf), w2.astype(bf), preferred_element_type=jnp.float32) + b2, 0.0)
    mu = jnp.dot(h2.astype(bf), w3.astype(bf), preferred_element_type=jnp.float32) + b3
    std = jnp.broadcast_to(jnp.exp(log_std), mu.shape)
    return mu, std


if __name__ == "__main__":
    key = jax.random.PRNGKey(0)
    k_params, k_small, k_big = jax.random.split(key, 3)

    input_dim, hidden_dim, output_dim = 8, 32, 4
    params = init_actor_params(k_params, input_dim, hidden_dim, output_dim)
    packed = pack_actor_params(params)       # one-time padding/cast, reused per step

    # Tiny batch -> fused plain-jnp dispatch path.
    state_small = jax.random.normal(k_small, (2, input_dim), jnp.float32)
    mu_s, std_s = actor_forward(state_small, packed)

    # Larger batch -> Pallas path (tb=80, grid=(2,) so both v7x cores get work).
    batch_big = 160
    state_big = jax.random.normal(k_big, (batch_big, input_dim), jnp.float32)
    mu_b, std_b = actor_forward(state_big, packed)

    jax.block_until_ready((mu_s, std_s, mu_b, std_b))

    for st, mu, std in ((state_small, mu_s, std_s), (state_big, mu_b, std_b)):
        mu_ref, std_ref = _ref_forward(st, params)
        assert mu.shape == (st.shape[0], output_dim) and std.shape == mu.shape
        assert jnp.allclose(mu, mu_ref, atol=2e-3, rtol=2e-3), "mu mismatch"
        assert jnp.allclose(std, std_ref, atol=1e-6), "std mismatch"

    print("KERNEL_OK")
</pallas_src>

<mosaic_0001>
module attributes {stable_mosaic.version = 11 : i64} {
  func.func @_actor_kernel(%arg0: i32, %arg1: memref<80x128xbf16, #tpu.memory_space<vmem>>, %arg2: memref<128x128xbf16, #tpu.memory_space<vmem>>, %arg3: memref<1x128xf32, #tpu.memory_space<vmem>>, %arg4: memref<128x128xbf16, #tpu.memory_space<vmem>>, %arg5: memref<1x128xf32, #tpu.memory_space<vmem>>, %arg6: memref<128x128xbf16, #tpu.memory_space<vmem>>, %arg7: memref<1x128xf32, #tpu.memory_space<vmem>>, %arg8: memref<80x128xf32, #tpu.memory_space<vmem>>) attributes {dimension_semantics = [#tpu.dimension_semantics<parallel>], iteration_bounds = array<i64: 2>, scalar_prefetch = 0 : i64, scratch_operands = 0 : i64, tpu.core_type = #tpu.core_type<tc>, window_params = [{transform_indices = @transform_0, window_bounds = array<i64: 80, 128>}, {pipeline_mode = #tpu.pipeline_mode<synchronous>, transform_indices = @transform_1, window_bounds = array<i64: 128, 128>}, {pipeline_mode = #tpu.pipeline_mode<synchronous>, transform_indices = @transform_2, window_bounds = array<i64: 1, 128>}, {pipeline_mode = #tpu.pipeline_mode<synchronous>, transform_indices = @transform_3, window_bounds = array<i64: 128, 128>}, {pipeline_mode = #tpu.pipeline_mode<synchronous>, transform_indices = @transform_4, window_bounds = array<i64: 1, 128>}, {pipeline_mode = #tpu.pipeline_mode<synchronous>, transform_indices = @transform_5, window_bounds = array<i64: 128, 128>}, {pipeline_mode = #tpu.pipeline_mode<synchronous>, transform_indices = @transform_6, window_bounds = array<i64: 1, 128>}, {transform_indices = @transform_7, window_bounds = array<i64: 80, 128>}]} {
    %c0 = arith.constant 0 : index
    %c0_0 = arith.constant 0 : index
    %0 = vector.load %arg1[%c0, %c0_0] : memref<80x128xbf16, #tpu.memory_space<vmem>>, vector<80x128xbf16>
    %c0_1 = arith.constant 0 : index
    %c0_2 = arith.constant 0 : index
    %1 = vector.load %arg2[%c0_1, %c0_2] : memref<128x128xbf16, #tpu.memory_space<vmem>>, vector<128x128xbf16>
    %cst = arith.constant dense<0.000000e+00> : vector<80x128xf32>
    %2 = tpu.matmul %0, %1, %cst {dimension_numbers = #tpu.dot_dimension_numbers<[1], [0], [0], [1], [0, 0, 1, 1], [], []>} : vector<80x128xbf16>, vector<128x128xbf16>, vector<80x128xf32> -> vector<80x128xf32>
    %c0_3 = arith.constant 0 : index
    %c0_4 = arith.constant 0 : index
    %3 = vector.load %arg3[%c0_3, %c0_4] : memref<1x128xf32, #tpu.memory_space<vmem>>, vector<1x128xf32>
    %4 = vector.broadcast %3 : vector<1x128xf32> to vector<80x128xf32>
    %5 = arith.addf %2, %4 : vector<80x128xf32>
    %cst_5 = arith.constant 0.000000e+00 : f32
    %6 = vector.broadcast %cst_5 : f32 to vector<80x128xf32>
    %7 = arith.maximumf %5, %6 : vector<80x128xf32>
    %8 = arith.truncf %7 : vector<80x128xf32> to vector<80x128xbf16>
    %c0_6 = arith.constant 0 : index
    %c0_7 = arith.constant 0 : index
    %9 = vector.load %arg4[%c0_6, %c0_7] : memref<128x128xbf16, #tpu.memory_space<vmem>>, vector<128x128xbf16>
    %cst_8 = arith.constant dense<0.000000e+00> : vector<80x128xf32>
    %10 = tpu.matmul %8, %9, %cst_8 {dimension_numbers = #tpu.dot_dimension_numbers<[1], [0], [0], [1], [0, 0, 1, 1], [], []>} : vector<80x128xbf16>, vector<128x128xbf16>, vector<80x128xf32> -> vector<80x128xf32>
    %c0_9 = arith.constant 0 : index
    %c0_10 = arith.constant 0 : index
    %11 = vector.load %arg5[%c0_9, %c0_10] : memref<1x128xf32, #tpu.memory_space<vmem>>, vector<1x128xf32>
    %12 = vector.broadcast %11 : vector<1x128xf32> to vector<80x128xf32>
    %13 = arith.addf %10, %12 : vector<80x128xf32>
    %cst_11 = arith.constant 0.000000e+00 : f32
    %14 = vector.broadcast %cst_11 : f32 to vector<80x128xf32>
    %15 = arith.maximumf %13, %14 : vector<80x128xf32>
    %16 = arith.truncf %15 : vector<80x128xf32> to vector<80x128xbf16>
    %c0_12 = arith.constant 0 : index
    %c0_13 = arith.constant 0 : index
    %17 = vector.load %arg6[%c0_12, %c0_13] : memref<128x128xbf16, #tpu.memory_space<vmem>>, vector<128x128xbf16>
    %cst_14 = arith.constant dense<0.000000e+00> : vector<80x128xf32>
    %18 = tpu.matmul %16, %17, %cst_14 {dimension_numbers = #tpu.dot_dimension_numbers<[1], [0], [0], [1], [0, 0, 1, 1], [], []>} : vector<80x128xbf16>, vector<128x128xbf16>, vector<80x128xf32> -> vector<80x128xf32>
    %c0_15 = arith.constant 0 : index
    %c0_16 = arith.constant 0 : index
    %19 = vector.load %arg7[%c0_15, %c0_16] : memref<1x128xf32, #tpu.memory_space<vmem>>, vector<1x128xf32>
    %20 = vector.broadcast %19 : vector<1x128xf32> to vector<80x128xf32>
    %21 = arith.addf %18, %20 : vector<80x128xf32>
    %c0_17 = arith.constant 0 : index
    %c0_18 = arith.constant 0 : index
    %22 = vector.load %arg8[%c0_17, %c0_18] : memref<80x128xf32, #tpu.memory_space<vmem>>, vector<80x128xf32>
    tpu.vector_store %arg8[%c0_17, %c0_18], %21 {strides = array<i32>} : memref<80x128xf32, #tpu.memory_space<vmem>>, vector<80x128xf32>,
    return
  }
  func.func @transform_0(%arg0: i32) -> (i32, i32) {
    %c0_i32 = arith.constant 0 : i32
    %c0_i32_0 = arith.constant 0 : i32
    return %arg0, %c0_i32 : i32, i32
  }
  func.func @transform_1(%arg0: i32) -> (i32, i32) {
    %c0_i32 = arith.constant 0 : i32
    %c0_i32_0 = arith.constant 0 : i32
    %c0_i32_1 = arith.constant 0 : i32
    return %c0_i32, %c0_i32_0 : i32, i32
  }
  func.func @transform_2(%arg0: i32) -> (i32, i32) {
    %c0_i32 = arith.constant 0 : i32
    %c0_i32_0 = arith.constant 0 : i32
    %c0_i32_1 = arith.constant 0 : i32
    return %c0_i32, %c0_i32_0 : i32, i32
  }
  func.func @transform_3(%arg0: i32) -> (i32, i32) {
    %c0_i32 = arith.constant 0 : i32
    %c0_i32_0 = arith.constant 0 : i32
    %c0_i32_1 = arith.constant 0 : i32
    return %c0_i32, %c0_i32_0 : i32, i32
  }
  func.func @transform_4(%arg0: i32) -> (i32, i32) {
    %c0_i32 = arith.constant 0 : i32
    %c0_i32_0 = arith.constant 0 : i32
    %c0_i32_1 = arith.constant 0 : i32
    return %c0_i32, %c0_i32_0 : i32, i32
  }
  func.func @transform_5(%arg0: i32) -> (i32, i32) {
    %c0_i32 = arith.constant 0 : i32
    %c0_i32_0 = arith.constant 0 : i32
    %c0_i32_1 = arith.constant 0 : i32
    return %c0_i32, %c0_i32_0 : i32, i32
  }
  func.func @transform_6(%arg0: i32) -> (i32, i32) {
    %c0_i32 = arith.constant 0 : i32
    %c0_i32_0 = arith.constant 0 : i32
    %c0_i32_1 = arith.constant 0 : i32
    return %c0_i32, %c0_i32_0 : i32, i32
  }
  func.func @transform_7(%arg0: i32) -> (i32, i32) {
    %c0_i32 = arith.constant 0 : i32
    %c0_i32_0 = arith.constant 0 : i32
    return %arg0, %c0_i32 : i32, i32
  }
}

</mosaic_0001>

<llo_original>
// kernel: tpu_custom_call.1
$region0: #{tpu_custom_call.1}
  #allocation0 [shape = 'u32[]', space=smem, size = 0x4, offset = 0x4, fixed_abs, tag = 'smem constant byte address 0x4 - core index']
  #allocation1 [shape = 'u32[144,128]{1,0:T(1,128)}', space=vmem, size = 0x12000, scoped, tag = 'internal scratch']
  %s0 = inlined_call_operand.hbm [shape: bf16[160,128], index: 0, kind: input, shape index: {}]
  %s1 = inlined_call_operand.hbm [shape: bf16[128,128], index: 1, kind: input, shape index: {}]
  %s2 = inlined_call_operand.vmem [shape: f32[1,128], index: 2, kind: input, shape index: {}]
  %s3 = inlined_call_operand.hbm [shape: bf16[128,128], index: 3, kind: input, shape index: {}]
  %s4 = inlined_call_operand.vmem [shape: f32[1,128], index: 4, kind: input, shape index: {}]
  %s5 = inlined_call_operand.hbm [shape: bf16[128,128], index: 5, kind: input, shape index: {}]
  %s6 = inlined_call_operand.vmem [shape: f32[1,128], index: 6, kind: input, shape index: {}]
  %s7 = inlined_call_operand.hbm [shape: f32[160,128], index: 7, kind: output, shape index: {}]
  %s8 = sld [smem:[#allocation0]]
  $region77: #{tpu_custom_call.1} parent=0
    _
  %s10 = ssub.s32 1, %s8
  %s11 = scalar_select 0, %s10, %s8
  $region1: #{tpu_custom_call.1} parent=0
    #allocation2 [shape = 'u8[40960]{0}', space=vmem, size = 0xa000, scoped, tag = 'input window, operand 0']
    #allocation3 [shape = 's32[2]{0}', space=sflag, size = 0x8, scoped, tag = 'scoped memory for tpu_custom_call.1']
    #allocation4 [shape = 's32[2]{0}', space=sflag, size = 0x8, scoped, tag = 'scoped memory for tpu_custom_call.1']
    #allocation5 [shape = 'u8[32768]{0}', space=vmem, size = 0x8000, scoped, tag = 'input window, operand 1, single buffered']
    #allocation6 [shape = 's32[1]{0}', space=sflag, size = 0x4, scoped, tag = 'scoped memory for tpu_custom_call.1']
    #allocation7 [shape = 'u8[32768]{0}', space=vmem, size = 0x8000, scoped, tag = 'input window, operand 3, single buffered']
    #allocation8 [shape = 'u8[32768]{0}', space=vmem, size = 0x8000, scoped, tag = 'input window, operand 5, single buffered']
    #allocation9 [shape = 's32[1]{0}', space=sflag, size = 0x4, scoped, tag = 'scoped memory for tpu_custom_call.1']
    #allocation10 [shape = 'u8[81920]{0}', space=vmem, size = 0x14000, scoped, tag = 'output window, operand 0']
    %12 = vsyncpa [#allocation3], 0
    %s13 = scalar_lea.sflag [#allocation3], 1
    %14 = vsyncpa %s13, 0
    %15 = vsyncpa [#allocation6], 0
    %16 = vsyncpa [#allocation9], 0
    %17 = vsyncpa [#allocation4], 0
    %s18 = scalar_lea.sflag [#allocation4], 1
    %19 = vsyncpa %s18, 0
    loop: start=0, step=1, limit=4
    $region2: #{tpu_custom_call.1} parent=1 // loop_pre_header
      _
    $region3: #{tpu_custom_call.1} parent=1 // loop_header
      %s21 = sphi 0, %s25
      %p22 = scmp.ge.s32.totalorder %s21, 4
      %s31 = sphi 0, %s33
      %s34 = sphi 0, %s31
      %s35 = sphi 0, %s34
      %s51 = sphi 0, %s35
      %s55 = sphi 0, %s55
      %s57 = sphi 0, %s55
      %s58 = sphi 0, %s57
      %s72 = sphi 0, %s58
      %s76 = sphi 0, %s76
      %s78 = sphi 0, %s76
      %s79 = sphi 0, %s78
      %s93 = sphi 0, %s79
      %s97 = sphi 0, %s97
      %s99 = sphi 0, %s97
      %s100 = sphi 0, %s99
      %s114 = sphi 0, %s100
      %s118 = sphi 0, %s118
      %s120 = sphi 0, %s118
      %s121 = sphi 0, %s120
      %s135 = sphi 0, %s121
      %s139 = sphi 0, %s139
      %s141 = sphi 0, %s139
      %s142 = sphi 0, %s141
      %s156 = sphi 0, %s142
      %s160 = sphi 0, %s160
      %s162 = sphi 0, %s160
      %s163 = sphi 0, %s162
      %s177 = sphi 0, %s163
      %s183 = sphi 0, %s185
      %s186 = sphi 0, %s183
      %s187 = sphi 0, %s186
      %s203 = sphi 0, %s187
    $region4: #{tpu_custom_call.1} parent=1 // loop_header_branch
      %24 = sbr.rel (%p22) target = $region8
    $region5: #{tpu_custom_call.1} parent=1 // loop_body
      %s26 = ssub.s32 %s21, 1
      %s27 = ssub.s32 %s21, 2
      %s28 = sadd.s32 %s21, 1
      %s29 = ssub.s32 %s21, %s28
      %p30 = scmp.eq.s32.totalorder %s29, 0
      %s32 = sadd.s32 %s31, 1
      %s33 = scalar_select %p30, %s31, %s32
      %p36 = pneg %p30
      %p37 = scmp.eq.s32.totalorder %s21, 1
      %p38 = por %p36, %p37
      %p39 = scmp.ne.s32.totalorder %s31, %s34
      %p40 = scmp.eq.s32.totalorder %s21, 0
      %p41 = por %p39, %p40
      %p42 = scmp.ne.s32.totalorder %s31, %s34
      %p43 = scmp.eq.s32.totalorder %s26, 1
      %p44 = por %p42, %p43
      %p45 = scmp.ne.s32.totalorder %s34, %s35
      %p46 = scmp.eq.s32.totalorder %s26, 0
      %p47 = por %p45, %p46
      %p48 = scmp.ne.s32.totalorder %s34, %s35
      %p49 = scmp.eq.s32.totalorder %s27, 1
      %p50 = por %p48, %p49
      %p52 = scmp.ne.s32.totalorder %s35, %s51
      %p53 = scmp.eq.s32.totalorder %s27, 0
      %p54 = por %p52, %p53
      %s56 = sadd.s32 %s55, 1
      %p59 = scmp.eq.s32.totalorder %s21, 1
      %p60 = scmp.ne.s32.totalorder %s55, %s57
      %p61 = scmp.eq.s32.totalorder %s21, 0
      %p62 = por %p60, %p61
      %p63 = scmp.ne.s32.totalorder %s55, %s57
      %p64 = scmp.eq.s32.totalorder %s26, 1
      %p65 = por %p63, %p64
      %p66 = scmp.ne.s32.totalorder %s57, %s58
      %p67 = scmp.eq.s32.totalorder %s26, 0
      %p68 = por %p66, %p67
      %p69 = scmp.ne.s32.totalorder %s57, %s58
      %p70 = scmp.eq.s32.totalorder %s27, 1
      %p71 = por %p69, %p70
      %p73 = scmp.ne.s32.totalorder %s58, %s72
      %p74 = scmp.eq.s32.totalorder %s27, 0
      %p75 = por %p73, %p74
      %s77 = sadd.s32 %s76, 1
      %p80 = scmp.eq.s32.totalorder %s21, 1
      %p81 = scmp.ne.s32.totalorder %s76, %s78
      %p82 = scmp.eq.s32.totalorder %s21, 0
      %p83 = por %p81, %p82
      %p84 = scmp.ne.s32.totalorder %s76, %s78
      %p85 = scmp.eq.s32.totalorder %s26, 1
      %p86 = por %p84, %p85
      %p87 = scmp.ne.s32.totalorder %s78, %s79
      %p88 = scmp.eq.s32.totalorder %s26, 0
      %p89 = por %p87, %p88
      %p90 = scmp.ne.s32.totalorder %s78, %s79
      %p91 = scmp.eq.s32.totalorder %s27, 1
      %p92 = por %p90, %p91
      %p94 = scmp.ne.s32.totalorder %s79, %s93
      %p95 = scmp.eq.s32.totalorder %s27, 0
      %p96 = por %p94, %p95
      %s98 = sadd.s32 %s97, 1
      %p101 = scmp.eq.s32.totalorder %s21, 1
      %p102 = scmp.ne.s32.totalorder %s97, %s99
      %p103 = scmp.eq.s32.totalorder %s21, 0
      %p104 = por %p102, %p103
      %p105 = scmp.ne.s32.totalorder %s97, %s99
      %p106 = scmp.eq.s32.totalorder %s26, 1
      %p107 = por %p105, %p106
      %p108 = scmp.ne.s32.totalorder %s99, %s100
      %p109 = scmp.eq.s32.totalorder %s26, 0
      %p110 = por %p108, %p109
      %p111 = scmp.ne.s32.totalorder %s99, %s100
      %p112 = scmp.eq.s32.totalorder %s27, 1
      %p113 = por %p111, %p112
      %p115 = scmp.ne.s32.totalorder %s100, %s114
      %p116 = scmp.eq.s32.totalorder %s27, 0
      %p117 = por %p115, %p116
      %s119 = sadd.s32 %s118, 1
      %p122 = scmp.eq.s32.totalorder %s21, 1
      %p123 = scmp.ne.s32.totalorder %s118, %s120
      %p124 = scmp.eq.s32.totalorder %s21, 0
      %p125 = por %p123, %p124
      %p126 = scmp.ne.s32.totalorder %s118, %s120
      %p127 = scmp.eq.s32.totalorder %s26, 1
      %p128 = por %p126, %p127
      %p129 = scmp.ne.s32.totalorder %s120, %s121
      %p130 = scmp.eq.s32.totalorder %s26, 0
      %p131 = por %p129, %p130
      %p132 = scmp.ne.s32.totalorder %s120, %s121
      %p133 = scmp.eq.s32.totalorder %s27, 1
      %p134 = por %p132, %p133
      %p136 = scmp.ne.s32.totalorder %s121, %s135
      %p137 = scmp.eq.s32.totalorder %s27, 0
      %p138 = por %p136, %p137
      %s140 = sadd.s32 %s139, 1
      %p143 = scmp.eq.s32.totalorder %s21, 1
      %p144 = scmp.ne.s32.totalorder %s139, %s141
      %p145 = scmp.eq.s32.totalorder %s21, 0
      %p146 = por %p144, %p145
      %p147 = scmp.ne.s32.totalorder %s139, %s141
      %p148 = scmp.eq.s32.totalorder %s26, 1
      %p149 = por %p147, %p148
      %p150 = scmp.ne.s32.totalorder %s141, %s142
      %p151 = scmp.eq.s32.totalorder %s26, 0
      %p152 = por %p150, %p151
      %p153 = scmp.ne.s32.totalorder %s141, %s142
      %p154 = scmp.eq.s32.totalorder %s27, 1
      %p155 = por %p153, %p154
      %p157 = scmp.ne.s32.totalorder %s142, %s156
      %p158 = scmp.eq.s32.totalorder %s27, 0
      %p159 = por %p157, %p158
      %s161 = sadd.s32 %s160, 1
      %p164 = scmp.eq.s32.totalorder %s21, 1
      %p165 = scmp.ne.s32.totalorder %s160, %s162
      %p166 = scmp.eq.s32.totalorder %s21, 0
      %p167 = por %p165, %p166
      %p168 = scmp.ne.s32.totalorder %s160, %s162
      %p169 = scmp.eq.s32.totalorder %s26, 1
      %p170 = por %p168, %p169
      %p171 = scmp.ne.s32.totalorder %s162, %s163
      %p172 = scmp.eq.s32.totalorder %s26, 0
      %p173 = por %p171, %p172
      %p174 = scmp.ne.s32.totalorder %s162, %s163
      %p175 = scmp.eq.s32.totalorder %s27, 1
      %p176 = por %p174, %p175
      %p178 = scmp.ne.s32.totalorder %s163, %s177
      %p179 = scmp.eq.s32.totalorder %s27, 0
      %p180 = por %p178, %p179
      %s181 = ssub.s32 %s21, %s28
      %p182 = scmp.eq.s32.totalorder %s181, 0
      %s184 = sadd.s32 %s183, 1
      %s185 = scalar_select %p182, %s183, %s184
      %p188 = pneg %p182
      %p189 = scmp.eq.s32.totalorder %s21, 1
      %p190 = por %p188, %p189
      %p191 = scmp.ne.s32.totalorder %s183, %s186
      %p192 = scmp.eq.s32.totalorder %s21, 0
      %p193 = por %p191, %p192
      %p194 = scmp.ne.s32.totalorder %s183, %s186
      %p195 = scmp.eq.s32.totalorder %s26, 1
      %p196 = por %p194, %p195
      %p197 = scmp.ne.s32.totalorder %s186, %s187
      %p198 = scmp.eq.s32.totalorder %s26, 0
      %p199 = por %p197, %p198
      %p200 = scmp.ne.s32.totalorder %s186, %s187
      %p201 = scmp.eq.s32.totalorder %s27, 1
      %p202 = por %p200, %p201
      %p204 = scmp.ne.s32.totalorder %s187, %s203
      %p205 = scmp.eq.s32.totalorder %s27, 0
      %p206 = por %p204, %p205
      %p207 = scmp.le.s32.totalorder 1, %s21
      %p208 = scmp.lt.s32.totalorder %s21, 3
      %p209 = pnand %p207, %p208
      %p210 = pneg %p209
      // Predicated region
      $region9: #{tpu_custom_call.1} parent=5 // pred_check
        _
      $region10: #{tpu_custom_call.1} parent=5 // pred_check_branch
        %212 = sbr.rel (%p209) target = $region12
      $region11: #{tpu_custom_call.1} parent=5 // pred_region
        %s213 = ssub.s32 %s21, 1
        // Predicated region
        $region13: #{tpu_custom_call.1} parent=11 // pred_check
          %p214 = pneg %p68
        $region14: #{tpu_custom_call.1} parent=11 // pred_check_branch
          %216 = sbr.rel (%p214) target = $region16
        $region15: #{tpu_custom_call.1} parent=11 // pred_region
          %s218 = ssub.s32 1024, 1024
          %219 = vsyncadd [#allocation6], %s218
          %s220 = sshll.u32 [#allocation5], 4
          %s221 = int_to_ptr.vmem [resolvable:$true] %s220
          %226 = dma.hbm_to_vmem [thread:$0]  %s1, 1024, %s221, [#allocation6], 64, 64, 4
        $region16: #{tpu_custom_call.1} parent=11 // pred_fallthru
          _
        // Predicated region
        $region17: #{tpu_custom_call.1} parent=11 // pred_check
          %p227 = pneg %p89
        $region18: #{tpu_custom_call.1} parent=11 // pred_check_branch
          %229 = sbr.rel (%p227) target = $region20
        $region19: #{tpu_custom_call.1} parent=11 // pred_region
          _
        $region20: #{tpu_custom_call.1} parent=11 // pred_fallthru
          _
        // Predicated region
        $region21: #{tpu_custom_call.1} parent=11 // pred_check
          %p230 = pneg %p110
        $region22: #{tpu_custom_call.1} parent=11 // pred_check_branch
          %232 = sbr.rel (%p230) target = $region24
        $region23: #{tpu_custom_call.1} parent=11 // pred_region
          %s234 = ssub.s32 1024, 1024
          %235 = vsyncadd [#allocation6], %s234
          %s236 = sshll.u32 [#allocation7], 4
          %s237 = int_to_ptr.vmem [resolvable:$true] %s236
          %242 = dma.hbm_to_vmem [thread:$0]  %s3, 1024, %s237, [#allocation6], 64, 64, 4
        $region24: #{tpu_custom_call.1} parent=11 // pred_fallthru
          _
        // Predicated region
        $region25: #{tpu_custom_call.1} parent=11 // pred_check
          %p243 = pneg %p131
        $region26: #{tpu_custom_call.1} parent=11 // pred_check_branch
          %245 = sbr.rel (%p243) target = $region28
        $region27: #{tpu_custom_call.1} parent=11 // pred_region
          _
        $region28: #{tpu_custom_call.1} parent=11 // pred_fallthru
          _
        // Predicated region
        $region29: #{tpu_custom_call.1} parent=11 // pred_check
          %p246 = pneg %p152
        $region30: #{tpu_custom_call.1} parent=11 // pred_check_branch
          %248 = sbr.rel (%p246) target = $region32
        $region31: #{tpu_custom_call.1} parent=11 // pred_region
          %s250 = ssub.s32 1024, 1024
          %251 = vsyncadd [#allocation9], %s250
          %s252 = sshll.u32 [#allocation8], 4
          %s253 = int_to_ptr.vmem [resolvable:$true] %s252
          %258 = dma.hbm_to_vmem [thread:$0]  %s5, 1024, %s253, [#allocation9], 64, 64, 4
        $region32: #{tpu_custom_call.1} parent=11 // pred_fallthru
          _
        // Predicated region
        $region33: #{tpu_custom_call.1} parent=11 // pred_check
          %p259 = pneg %p173
        $region34: #{tpu_custom_call.1} parent=11 // pred_check_branch
          %261 = sbr.rel (%p259) target = $region36
        $region35: #{tpu_custom_call.1} parent=11 // pred_region
          _
        $region36: #{tpu_custom_call.1} parent=11 // pred_fallthru
          _
      $region12: #{tpu_custom_call.1} parent=5 // pred_fallthru
        _
      %p262 = scmp.lt.s32.totalorder %s21, 2
      // Predicated region
      $region37: #{tpu_custom_call.1} parent=5 // pred_check
        %p263 = pneg %p262
      $region38: #{tpu_custom_call.1} parent=5 // pred_check_branch
        %265 = sbr.rel (%p263) target = $region40
      $region39: #{tpu_custom_call.1} parent=5 // pred_region
        // Predicated region
        $region41: #{tpu_custom_call.1} parent=39 // pred_check
          %p266 = pneg %p41
        $region42: #{tpu_custom_call.1} parent=39 // pred_check_branch
          %268 = sbr.rel (%p266) target = $region44
        $region43: #{tpu_custom_call.1} parent=39 // pred_region
          %s269 = sand.u32 %s31, 1
          %s270 = scalar_lea.sflag [#allocation3], %s269
          %s271 = sand.u32 %s31, 1
          %s272 = smul.addr %s271, 40
          %s273 = scalar_lea.vmem [#allocation2], %s272
          %s274 = smul.u32 10, %s21
          %s276 = ssub.s32 640, 640
          %277 = vsyncadd %s270, %s276
          %s278 = smul.addr %s274, 64
          %s279 = scalar_lea.hbm %s0, %s278
          %s280 = sshll.u32 %s273, 4
          %s281 = int_to_ptr.vmem [resolvable:$true] %s280
          %286 = dma.hbm_to_vmem [thread:$0]  %s279, 640, %s281, %s270, 64, 64, 4
        $region44: #{tpu_custom_call.1} parent=39 // pred_fallthru
          _
      $region40: #{tpu_custom_call.1} parent=5 // pred_fallthru
        _
      %p287 = scmp.le.s32.totalorder 1, %s21
      %p288 = scmp.lt.s32.totalorder %s21, 3
      %p289 = pnand %p287, %p288
      %p290 = pneg %p289
      // Predicated region
      $region45: #{tpu_custom_call.1} parent=5 // pred_check
        _
      $region46: #{tpu_custom_call.1} parent=5 // pred_check_branch
        %292 = sbr.rel (%p289) target = $region48
      $region47: #{tpu_custom_call.1} parent=5 // pred_region
        %s293 = ssub.s32 %s21, 1
        %s294 = sand.u32 %s34, 1
        %s295 = scalar_lea.sflag [#allocation3], %s294
        %s296 = sand.u32 %s34, 1
        %s297 = smul.addr %s296, 40
        %s298 = scalar_lea.vmem [#allocation2], %s297
        // Predicated region
        $region49: #{tpu_custom_call.1} parent=47 // pred_check
          %p299 = pneg %p47
        $region50: #{tpu_custom_call.1} parent=47 // pred_check_branch
          %301 = sbr.rel (%p299) target = $region52
        $region51: #{tpu_custom_call.1} parent=47 // pred_region
          %302 = dma.done %s295, 640
        $region52: #{tpu_custom_call.1} parent=47 // pred_fallthru
          _
        // Predicated region
        $region53: #{tpu_custom_call.1} parent=47 // pred_check
          %p303 = pneg %p68
        $region54: #{tpu_custom_call.1} parent=47 // pred_check_branch
          %305 = sbr.rel (%p303) target = $region56
        $region55: #{tpu_custom_call.1} parent=47 // pred_region
          %306 = dma.done [#allocation6], 1024
        $region56: #{tpu_custom_call.1} parent=47 // pred_fallthru
          _
        // Predicated region
        $region57: #{tpu_custom_call.1} parent=47 // pred_check
          %p307 = pneg %p110
        $region58: #{tpu_custom_call.1} parent=47 // pred_check_branch
          %309 = sbr.rel (%p307) target = $region60
        $region59: #{tpu_custom_call.1} parent=47 // pred_region
          %310 = dma.done [#allocation6], 1024
        $region60: #{tpu_custom_call.1} parent=47 // pred_fallthru
          _
        // Predicated region
        $region61: #{tpu_custom_call.1} parent=47 // pred_check
          %p311 = pneg %p152
        $region62: #{tpu_custom_call.1} parent=47 // pred_check_branch
          %313 = sbr.rel (%p311) target = $region64
        $region63: #{tpu_custom_call.1} parent=47 // pred_region
          %314 = dma.done [#allocation9], 1024
        $region64: #{tpu_custom_call.1} parent=47 // pred_fallthru
          _
        %s315 = sand.u32 %s34, 1
        %s316 = scalar_lea.sflag [#allocation3], %s315
        %s317 = sand.u32 %s34, 1
        %s318 = smul.addr %s317, 40
        %s319 = scalar_lea.vmem [#allocation2], %s318
        %p320 = pneg %p47
        %p321 = pneg %p44
        %p322 = pneg %p68
        %p323 = pneg %p65
        %p324 = pneg %p89
        %p325 = pneg %p86
        %p326 = pneg %p110
        %p327 = pneg %p107
        %p328 = pneg %p131
        %p329 = pneg %p128
        %p330 = pneg %p152
        %p331 = pneg %p149
        %p332 = pneg %p173
        %p333 = pneg %p170
        %p334 = pneg %p199
        %p335 = pneg %p196
        %s336 = sand.u32 %s186, 1
        %s337 = scalar_lea.sflag [#allocation4], %s336
        %s338 = sand.u32 %s186, 1
        %s339 = smul.addr %s338, 80
        %s340 = scalar_lea.vmem [#allocation10], %s339
        %s341 = smul.u32 10, %s26
        %s342 = smul.u32 10, %s26
        %v344 = vld [vmem:[%s298] sm:$0xf]
        %v345 = vld [vmem:[%s298 + $0x4] sm:$0xf]
        %v346 = vld [vmem:[%s298 + $0x8] sm:$0xf]
        %v347 = vld [vmem:[%s298 + $0xc] sm:$0xf]
        %v348 = vld [vmem:[%s298 + $0x10] sm:$0xf]
        %v349 = vld [vmem:[%s298 + $0x14] sm:$0xf]
        %v350 = vld [vmem:[%s298 + $0x18] sm:$0xf]
        %v351 = vld [vmem:[%s298 + $0x1c] sm:$0xf]
        %v352 = vld [vmem:[%s298 + $0x20] sm:$0xf]
        %v353 = vld [vmem:[%s298 + $0x24] sm:$0xf]
        %v354 = vld [vmem:[#allocation5] sm:$0xf]
        %v355 = vld [vmem:[#allocation5 + $0x4] sm:$0xf]
        %v356 = vld [vmem:[#allocation5 + $0x8] sm:$0xf]
        %v357 = vld [vmem:[#allocation5 + $0xc] sm:$0xf]
        %v358 = vld [vmem:[#allocation5 + $0x10] sm:$0xf]
        %v359 = vld [vmem:[#allocation5 + $0x14] sm:$0xf]
        %v360 = vld [vmem:[#allocation5 + $0x18] sm:$0xf]
        %v361 = vld [vmem:[#allocation5 + $0x1c] sm:$0xf]
        %v362 = vld [vmem:[#allocation5 + $0x20] sm:$0xf]
        %v363 = vld [vmem:[#allocation5 + $0x24] sm:$0xf]
        %v364 = vld [vmem:[#allocation5 + $0x28] sm:$0xf]
        %v365 = vld [vmem:[#allocation5 + $0x2c] sm:$0xf]
        %v366 = vld [vmem:[#allocation5 + $0x30] sm:$0xf]
        %v367 = vld [vmem:[#allocation5 + $0x34] sm:$0xf]
        %v368 = vld [vmem:[#allocation5 + $0x38] sm:$0xf]
        %v369 = vld [vmem:[#allocation5 + $0x3c] sm:$0xf]
        %v370 = vld [vmem:[%s2] sm:$0x1]
        %v372 = vlaneseq
        %v373 = vshrl.u32 %v372, 7
        %v374 = vsub.s32 0, %v373
        %v375 = vrot.slane %v370, %v374
        %v387 = vunpack.c.l.b16 %v344
        %v388 = vunpack.c.l.b16 %v345
        %v389 = vunpack.c.l.b16 %v346
        %v390 = vunpack.c.l.b16 %v347
        %v391 = vunpack.c.l.b16 %v348
        %v392 = vunpack.c.l.b16 %v349
        %v393 = vunpack.c.l.b16 %v350
        %v394 = vunpack.c.l.b16 %v351
        %v395 = vunpack.c.l.b16 %v352
        %v396 = vunpack.c.l.b16 %v353
        %v397 = vpack.c.b16 %v388, %v387
        %v398 = vpack.c.b16 %v390, %v389
        %v399 = vpack.c.b16 %v392, %v391
        %v400 = vpack.c.b16 %v394, %v393
        %v401 = vpack.c.b16 %v396, %v395
        %v423 = vunpack.c.l.b16 %v354
        %v424 = vunpack.c.l.b16 %v355
        %v425 = vunpack.c.l.b16 %v356
        %v426 = vunpack.c.l.b16 %v357
        %v427 = vunpack.c.l.b16 %v358
        %v428 = vunpack.c.l.b16 %v359
        %v429 = vunpack.c.l.b16 %v360
        %v430 = vunpack.c.l.b16 %v361
        %v431 = vunpack.c.l.b16 %v362
        %v432 = vunpack.c.l.b16 %v363
        %v433 = vunpack.c.l.b16 %v364
        %v434 = vunpack.c.l.b16 %v365
        %v435 = vunpack.c.l.b16 %v366
        %v436 = vunpack.c.l.b16 %v367
        %v437 = vunpack.c.l.b16 %v368
        %v438 = vunpack.c.l.b16 %v369
        %v439 = vpack.c.b16 %v424, %v423
        %v440 = vpack.c.b16 %v426, %v425
        %v441 = vpack.c.b16 %v428, %v427
        %v442 = vpack.c.b16 %v430, %v429
        %v443 = vpack.c.b16 %v432, %v431
        %v444 = vpack.c.b16 %v434, %v433
        %v445 = vpack.c.b16 %v436, %v435
        %v446 = vpack.c.b16 %v438, %v437
        %455 = vmatprep.subr.bf16.mxu0 0
        %456 = vmatpush1.bf16.msra.mxu0 %v446
        %457 = vmatprep.subr.bf16.mxu0 0
        %458 = vmatpush1.bf16.msra.mxu0 %v445
        %459 = vmatprep.subr.bf16.mxu0 0
        %460 = vmatpush1.bf16.msra.mxu0 %v444
        %461 = vmatprep.subr.bf16.mxu0 0
        %462 = vmatpush1.bf16.msra.mxu0 %v443
        %463 = vmatprep.subr.bf16.mxu0 0
        %464 = vmatpush1.bf16.msra.mxu0 %v442
        %465 = vmatprep.subr.bf16.mxu0 0
        %466 = vmatpush1.bf16.msra.mxu0 %v441
        %467 = vmatprep.subr.bf16.mxu0 0
        %468 = vmatpush1.bf16.msra.mxu0 %v440
        %469 = vmatprep.subr.bf16.mxu0 0
        %470 = vmatpush1.bf16.msra.mxu0 %v439
        %471 = vmatprep.subr.bf16.mxu0 0
        %472 = vmatpush2.bf16.msra.mxu0 0
        %473 = vmatprep.subr.bf16.mxu0 0
        %474 = vmatpush2.bf16.msra.mxu0 0
        %475 = vmatprep.subr.bf16.mxu0 0
        %476 = vmatpush2.bf16.msra.mxu0 0
        %477 = vmatprep.subr.bf16.mxu0 0
        %478 = vmatpush2.bf16.msra.mxu0 0
        %479 = vmatprep.subr.bf16.mxu0 0
        %480 = vmatpush2.bf16.msra.mxu0 0
        %481 = vmatprep.subr.bf16.mxu0 0
        %482 = vmatpush2.bf16.msra.mxu0 0
        %483 = vmatprep.subr.bf16.mxu0 0
        %484 = vmatpush2.bf16.msra.mxu0 0
        %485 = vmatprep.subr.bf16.mxu0 0
        %486 = vmatpush2.bf16.msra.mxu0 0
        %487 = vmatprep.mubr.bf16.mxu0 0
        %488 = vmatmul.mubr.bf16.gmra.mxu0 %v397
        %v489 = vpop.f32.mrf.mxu0
        %v490 = vadd.f32 %v375, %v489
        %v491 = vpop.f32.mrf.mxu0
        %v492 = vpop.f32.mrf.mxu0
        %v493 = vadd.f32 %v375, %v492
        %v494 = vpop.f32.mrf.mxu0
        %495 = vmatprep.mubr.bf16.mxu0 0
        %496 = vmatmul.mubr.bf16.gmra.mxu0 %v398
        %v497 = vpop.f32.mrf.mxu0
        %v498 = vadd.f32 %v375, %v497
        %v499 = vpop.f32.mrf.mxu0
        %v500 = vpop.f32.mrf.mxu0
        %v501 = vadd.f32 %v375, %v500
        %v502 = vpop.f32.mrf.mxu0
        %503 = vmatprep.mubr.bf16.mxu0 0
        %504 = vmatmul.mubr.bf16.gmra.mxu0 %v399
        %v505 = vpop.f32.mrf.mxu0
        %v506 = vadd.f32 %v375, %v505
        %v507 = vpop.f32.mrf.mxu0
        %v508 = vpop.f32.mrf.mxu0
        %v509 = vadd.f32 %v375, %v508
        %v510 = vpop.f32.mrf.mxu0
        %511 = vmatprep.mubr.bf16.mxu0 0
        %512 = vmatmul.mubr.bf16.gmra.mxu0 %v400
        %v513 = vpop.f32.mrf.mxu0
        %v514 = vadd.f32 %v375, %v513
        %v515 = vpop.f32.mrf.mxu0
        %v516 = vpop.f32.mrf.mxu0
        %v517 = vadd.f32 %v375, %v516
        %v518 = vpop.f32.mrf.mxu0
        %519 = vmatprep.mubr.bf16.mxu0 0
        %520 = vmatmul.mubr.bf16.gmra.mxu0 %v401
        %v521 = vpop.f32.mrf.mxu0
        %v522 = vadd.f32 %v375, %v521
        %v523 = vpop.f32.mrf.mxu0
        %v524 = vpop.f32.mrf.mxu0
        %v525 = vadd.f32 %v375, %v524
        %v526 = vpop.f32.mrf.mxu0
        %527 = vdwg.mxu0
        %v528 = vmax.f32 %v490, 0.0
        %v529 = vmax.f32 %v493, 0.0
        %v530 = vmax.f32 %v498, 0.0
        %v531 = vmax.f32 %v501, 0.0
        %v532 = vmax.f32 %v506, 0.0
        %v533 = vmax.f32 %v509, 0.0
        %v534 = vmax.f32 %v514, 0.0
        %v535 = vmax.f32 %v517, 0.0
        %v536 = vmax.f32 %v522, 0.0
        %v537 = vmax.f32 %v525, 0.0
        %v538 = vpack.c.bf16 %v529, %v528
        %v539 = vpack.c.bf16 %v531, %v530
        %v540 = vpack.c.bf16 %v533, %v532
        %v541 = vpack.c.bf16 %v535, %v534
        %v542 = vpack.c.bf16 %v537, %v536
        %v543 = vld [vmem:[#allocation7] sm:$0xf]
        %v544 = vld [vmem:[#allocation7 + $0x4] sm:$0xf]
        %v545 = vld [vmem:[#allocation7 + $0x8] sm:$0xf]
        %v546 = vld [vmem:[#allocation7 + $0xc] sm:$0xf]
        %v547 = vld [vmem:[#allocation7 + $0x10] sm:$0xf]
        %v548 = vld [vmem:[#allocation7 + $0x14] sm:$0xf]
        %v549 = vld [vmem:[#allocation7 + $0x18] sm:$0xf]
        %v550 = vld [vmem:[#allocation7 + $0x1c] sm:$0xf]
        %v551 = vld [vmem:[#allocation7 + $0x20] sm:$0xf]
        %v552 = vld [vmem:[#allocation7 + $0x24] sm:$0xf]
        %v553 = vld [vmem:[#allocation7 + $0x28] sm:$0xf]
        %v554 = vld [vmem:[#allocation7 + $0x2c] sm:$0xf]
        %v555 = vld [vmem:[#allocation7 + $0x30] sm:$0xf]
        %v556 = vld [vmem:[#allocation7 + $0x34] sm:$0xf]
        %v557 = vld [vmem:[#allocation7 + $0x38] sm:$0xf]
        %v558 = vld [vmem:[#allocation7 + $0x3c] sm:$0xf]
        %v559 = vld [vmem:[%s4] sm:$0x1]
        %v561 = vlaneseq
        %v562 = vshrl.u32 %v561, 7
        %v563 = vsub.s32 0, %v562
        %v564 = vrot.slane %v559, %v563
        %v582 = vunpack.c.l.b16 %v543
        %v583 = vunpack.c.l.b16 %v544
        %v584 = vunpack.c.l.b16 %v545
        %v585 = vunpack.c.l.b16 %v546
        %v586 = vunpack.c.l.b16 %v547
        %v587 = vunpack.c.l.b16 %v548
        %v588 = vunpack.c.l.b16 %v549
        %v589 = vunpack.c.l.b16 %v550
        %v590 = vunpack.c.l.b16 %v551
        %v591 = vunpack.c.l.b16 %v552
        %v592 = vunpack.c.l.b16 %v553
        %v593 = vunpack.c.l.b16 %v554
        %v594 = vunpack.c.l.b16 %v555
        %v595 = vunpack.c.l.b16 %v556
        %v596 = vunpack.c.l.b16 %v557
        %v597 = vunpack.c.l.b16 %v558
        %v598 = vpack.c.b16 %v583, %v582
        %v599 = vpack.c.b16 %v585, %v584
        %v600 = vpack.c.b16 %v587, %v586
        %v601 = vpack.c.b16 %v589, %v588
        %v602 = vpack.c.b16 %v591, %v590
        %v603 = vpack.c.b16 %v593, %v592
        %v604 = vpack.c.b16 %v595, %v594
        %v605 = vpack.c.b16 %v597, %v596
        %614 = vmatprep.subr.bf16.mxu0 0
        %615 = vmatpush1.bf16.msra.mxu0 %v605
        %616 = vmatprep.subr.bf16.mxu0 0
        %617 = vmatpush1.bf16.msra.mxu0 %v604
        %618 = vmatprep.subr.bf16.mxu0 0
        %619 = vmatpush1.bf16.msra.mxu0 %v603
        %620 = vmatprep.subr.bf16.mxu0 0
        %621 = vmatpush1.bf16.msra.mxu0 %v602
        %622 = vmatprep.subr.bf16.mxu0 0
        %623 = vmatpush1.bf16.msra.mxu0 %v601
        %624 = vmatprep.subr.bf16.mxu0 0
        %625 = vmatpush1.bf16.msra.mxu0 %v600
        %626 = vmatprep.subr.bf16.mxu0 0
        %627 = vmatpush1.bf16.msra.mxu0 %v599
        %628 = vmatprep.subr.bf16.mxu0 0
        %629 = vmatpush1.bf16.msra.mxu0 %v598
        %630 = vmatprep.subr.bf16.mxu0 0
        %631 = vmatpush2.bf16.msra.mxu0 0
        %632 = vmatprep.subr.bf16.mxu0 0
        %633 = vmatpush2.bf16.msra.mxu0 0
        %634 = vmatprep.subr.bf16.mxu0 0
        %635 = vmatpush2.bf16.msra.mxu0 0
        %636 = vmatprep.subr.bf16.mxu0 0
        %637 = vmatpush2.bf16.msra.mxu0 0
        %638 = vmatprep.subr.bf16.mxu0 0
        %639 = vmatpush2.bf16.msra.mxu0 0
        %640 = vmatprep.subr.bf16.mxu0 0
        %641 = vmatpush2.bf16.msra.mxu0 0
        %642 = vmatprep.subr.bf16.mxu0 0
        %643 = vmatpush2.bf16.msra.mxu0 0
        %644 = vmatprep.subr.bf16.mxu0 0
        %645 = vmatpush2.bf16.msra.mxu0 0
        %646 = vmatprep.mubr.bf16.mxu0 0
        %647 = vmatmul.mubr.bf16.gmra.mxu0 %v538
        %v648 = vpop.f32.mrf.mxu0
        %v649 = vadd.f32 %v564, %v648
        %v650 = vpop.f32.mrf.mxu0
        %v651 = vpop.f32.mrf.mxu0
        %v652 = vadd.f32 %v564, %v651
        %v653 = vpop.f32.mrf.mxu0
        %654 = vmatprep.mubr.bf16.mxu0 0
        %655 = vmatmul.mubr.bf16.gmra.mxu0 %v539
        %v656 = vpop.f32.mrf.mxu0
        %v657 = vadd.f32 %v564, %v656
        %v658 = vpop.f32.mrf.mxu0
        %v659 = vpop.f32.mrf.mxu0
        %v660 = vadd.f32 %v564, %v659
        %v661 = vpop.f32.mrf.mxu0
        %662 = vmatprep.mubr.bf16.mxu0 0
        %663 = vmatmul.mubr.bf16.gmra.mxu0 %v540
        %v664 = vpop.f32.mrf.mxu0
        %v665 = vadd.f32 %v564, %v664
        %v666 = vpop.f32.mrf.mxu0
        %v667 = vpop.f32.mrf.mxu0
        %v668 = vadd.f32 %v564, %v667
        %v669 = vpop.f32.mrf.mxu0
        %670 = vmatprep.mubr.bf16.mxu0 0
        %671 = vmatmul.mubr.bf16.gmra.mxu0 %v541
        %v672 = vpop.f32.mrf.mxu0
        %v673 = vadd.f32 %v564, %v672
        %v674 = vpop.f32.mrf.mxu0
        %v675 = vpop.f32.mrf.mxu0
        %v676 = vadd.f32 %v564, %v675
        %v677 = vpop.f32.mrf.mxu0
        %678 = vmatprep.mubr.bf16.mxu0 0
        %679 = vmatmul.mubr.bf16.gmra.mxu0 %v542
        %v680 = vpop.f32.mrf.mxu0
        %v681 = vadd.f32 %v564, %v680
        %v682 = vpop.f32.mrf.mxu0
        %v683 = vpop.f32.mrf.mxu0
        %v684 = vadd.f32 %v564, %v683
        %v685 = vpop.f32.mrf.mxu0
        %686 = vdwg.mxu0
        %v687 = vmax.f32 %v649, 0.0
        %v688 = vmax.f32 %v652, 0.0
        %v689 = vmax.f32 %v657, 0.0
        %v690 = vmax.f32 %v660, 0.0
        %v691 = vmax.f32 %v665, 0.0
        %v692 = vmax.f32 %v668, 0.0
        %v693 = vmax.f32 %v673, 0.0
        %v694 = vmax.f32 %v676, 0.0
        %v695 = vmax.f32 %v681, 0.0
        %v696 = vmax.f32 %v684, 0.0
        %v697 = vpack.c.bf16 %v688, %v687
        %v698 = vpack.c.bf16 %v690, %v689
        %v699 = vpack.c.bf16 %v692, %v691
        %v700 = vpack.c.bf16 %v694, %v693
        %v701 = vpack.c.bf16 %v696, %v695
        %v702 = vld [vmem:[#allocation8] sm:$0xf]
        %v703 = vld [vmem:[#allocation8 + $0x4] sm:$0xf]
        %v704 = vld [vmem:[#allocation8 + $0x8] sm:$0xf]
        %v705 = vld [vmem:[#allocation8 + $0xc] sm:$0xf]
        %v706 = vld [vmem:[#allocation8 + $0x10] sm:$0xf]
        %v707 = vld [vmem:[#allocation8 + $0x14] sm:$0xf]
        %v708 = vld [vmem:[#allocation8 + $0x18] sm:$0xf]
        %v709 = vld [vmem:[#allocation8 + $0x1c] sm:$0xf]
        %v710 = vld [vmem:[#allocation8 + $0x20] sm:$0xf]
        %v711 = vld [vmem:[#allocation8 + $0x24] sm:$0xf]
        %v712 = vld [vmem:[#allocation8 + $0x28] sm:$0xf]
        %v713 = vld [vmem:[#allocation8 + $0x2c] sm:$0xf]
        %v714 = vld [vmem:[#allocation8 + $0x30] sm:$0xf]
        %v715 = vld [vmem:[#allocation8 + $0x34] sm:$0xf]
        %v716 = vld [vmem:[#allocation8 + $0x38] sm:$0xf]
        %v717 = vld [vmem:[#allocation8 + $0x3c] sm:$0xf]
        %v718 = vld [vmem:[%s6] sm:$0x1]
        %v720 = vlaneseq
        %v721 = vshrl.u32 %v720, 7
        %v722 = vsub.s32 0, %v721
        %v723 = vrot.slane %v718, %v722
        %v741 = vunpack.c.l.b16 %v702
        %v742 = vunpack.c.l.b16 %v703
        %v743 = vunpack.c.l.b16 %v704
        %v744 = vunpack.c.l.b16 %v705
        %v745 = vunpack.c.l.b16 %v706
        %v746 = vunpack.c.l.b16 %v707
        %v747 = vunpack.c.l.b16 %v708
        %v748 = vunpack.c.l.b16 %v709
        %v749 = vunpack.c.l.b16 %v710
        %v750 = vunpack.c.l.b16 %v711
        %v751 = vunpack.c.l.b16 %v712
        %v752 = vunpack.c.l.b16 %v713
        %v753 = vunpack.c.l.b16 %v714
        %v754 = vunpack.c.l.b16 %v715
        %v755 = vunpack.c.l.b16 %v716
        %v756 = vunpack.c.l.b16 %v717
        %v757 = vpack.c.b16 %v742, %v741
        %v758 = vpack.c.b16 %v744, %v743
        %v759 = vpack.c.b16 %v746, %v745
        %v760 = vpack.c.b16 %v748, %v747
        %v761 = vpack.c.b16 %v750, %v749
        %v762 = vpack.c.b16 %v752, %v751
        %v763 = vpack.c.b16 %v754, %v753
        %v764 = vpack.c.b16 %v756, %v755
        %773 = vmatprep.subr.bf16.mxu0 0
        %774 = vmatpush1.bf16.msra.mxu0 %v764
        %775 = vmatprep.subr.bf16.mxu0 0
        %776 = vmatpush1.bf16.msra.mxu0 %v763
        %777 = vmatprep.subr.bf16.mxu0 0
        %778 = vmatpush1.bf16.msra.mxu0 %v762
        %779 = vmatprep.subr.bf16.mxu0 0
        %780 = vmatpush1.bf16.msra.mxu0 %v761
        %781 = vmatprep.subr.bf16.mxu0 0
        %782 = vmatpush1.bf16.msra.mxu0 %v760
        %783 = vmatprep.subr.bf16.mxu0 0
        %784 = vmatpush1.bf16.msra.mxu0 %v759
        %785 = vmatprep.subr.bf16.mxu0 0
        %786 = vmatpush1.bf16.msra.mxu0 %v758
        %787 = vmatprep.subr.bf16.mxu0 0
        %788 = vmatpush1.bf16.msra.mxu0 %v757
        %789 = vmatprep.subr.bf16.mxu0 0
        %790 = vmatpush2.bf16.msra.mxu0 0
        %791 = vmatprep.subr.bf16.mxu0 0
        %792 = vmatpush2.bf16.msra.mxu0 0
        %793 = vmatprep.subr.bf16.mxu0 0
        %794 = vmatpush2.bf16.msra.mxu0 0
        %795 = vmatprep.subr.bf16.mxu0 0
        %796 = vmatpush2.bf16.msra.mxu0 0
        %797 = vmatprep.subr.bf16.mxu0 0
        %798 = vmatpush2.bf16.msra.mxu0 0
        %799 = vmatprep.subr.bf16.mxu0 0
        %800 = vmatpush2.bf16.msra.mxu0 0
        %801 = vmatprep.subr.bf16.mxu0 0
        %802 = vmatpush2.bf16.msra.mxu0 0
        %803 = vmatprep.subr.bf16.mxu0 0
        %804 = vmatpush2.bf16.msra.mxu0 0
        %805 = vmatprep.mubr.bf16.mxu0 0
        %806 = vmatmul.mubr.bf16.gmra.mxu0 %v697
        %v807 = vpop.f32.mrf.mxu0
        %v808 = vadd.f32 %v723, %v807
        %v809 = vpop.f32.mrf.mxu0
        %v810 = vpop.f32.mrf.mxu0
        %v811 = vadd.f32 %v723, %v810
        %v812 = vpop.f32.mrf.mxu0
        %813 = vmatprep.mubr.bf16.mxu0 0
        %814 = vmatmul.mubr.bf16.gmra.mxu0 %v698
        %v815 = vpop.f32.mrf.mxu0
        %v816 = vadd.f32 %v723, %v815
        %v817 = vpop.f32.mrf.mxu0
        %v818 = vpop.f32.mrf.mxu0
        %v819 = vadd.f32 %v723, %v818
        %v820 = vpop.f32.mrf.mxu0
        %821 = vmatprep.mubr.bf16.mxu0 0
        %822 = vmatmul.mubr.bf16.gmra.mxu0 %v699
        %v823 = vpop.f32.mrf.mxu0
        %v824 = vadd.f32 %v723, %v823
        %v825 = vpop.f32.mrf.mxu0
        %v826 = vpop.f32.mrf.mxu0
        %v827 = vadd.f32 %v723, %v826
        %v828 = vpop.f32.mrf.mxu0
        %829 = vmatprep.mubr.bf16.mxu0 0
        %830 = vmatmul.mubr.bf16.gmra.mxu0 %v700
        %v831 = vpop.f32.mrf.mxu0
        %v832 = vadd.f32 %v723, %v831
        %v833 = vpop.f32.mrf.mxu0
        %v834 = vpop.f32.mrf.mxu0
        %v835 = vadd.f32 %v723, %v834
        %v836 = vpop.f32.mrf.mxu0
        %837 = vmatprep.mubr.bf16.mxu0 0
        %838 = vmatmul.mubr.bf16.gmra.mxu0 %v701
        %v839 = vpop.f32.mrf.mxu0
        %v840 = vadd.f32 %v723, %v839
        %v841 = vpop.f32.mrf.mxu0
        %v842 = vpop.f32.mrf.mxu0
        %v843 = vadd.f32 %v723, %v842
        %v844 = vpop.f32.mrf.mxu0
        %845 = vdwg.mxu0
        %846 = vst [vmem:[%s340] sm:$0xff] %v808
        %847 = vst [vmem:[%s340 + $0x8] sm:$0xff] %v811
        %848 = vst [vmem:[%s340 + $0x10] sm:$0xff] %v816
        %849 = vst [vmem:[%s340 + $0x18] sm:$0xff] %v819
        %850 = vst [vmem:[%s340 + $0x20] sm:$0xff] %v824
        %851 = vst [vmem:[%s340 + $0x28] sm:$0xff] %v827
        %852 = vst [vmem:[%s340 + $0x30] sm:$0xff] %v832
        %853 = vst [vmem:[%s340 + $0x38] sm:$0xff] %v835
        %854 = vst [vmem:[%s340 + $0x40] sm:$0xff] %v840
        %855 = vst [vmem:[%s340 + $0x48] sm:$0xff] %v843
        %s856 = sand.u32 %s186, 1
        %s857 = scalar_lea.sflag [#allocation4], %s856
        %s858 = sand.u32 %s186, 1
        %s859 = smul.addr %s858, 80
        %s860 = scalar_lea.vmem [#allocation10], %s859
        // Predicated region
        $region65: #{tpu_custom_call.1} parent=47 // pred_check
          %p861 = pneg %p196
        $region66: #{tpu_custom_call.1} parent=47 // pred_check_branch
          %863 = sbr.rel (%p861) target = $region68
        $region67: #{tpu_custom_call.1} parent=47 // pred_region
          %s864 = smul.u32 10, %s26
          %s866 = ssub.s32 1280, 1280
          %867 = vsyncadd %s857, %s866
          %s868 = smul.addr %s864, 128
          %s869 = scalar_lea.hbm %s7, %s868
          %s870 = sshll.u32 %s860, 4
          %s871 = int_to_ptr.vmem [resolvable:$true] %s870
          %876 = dma.vmem_to_hbm [thread:$0]  %s871, 1280, %s869, %s857, 128, 128, 8
        $region68: #{tpu_custom_call.1} parent=47 // pred_fallthru
          _
      $region48: #{tpu_custom_call.1} parent=5 // pred_fallthru
        _
      %p877 = scmp.le.s32.totalorder 2, %s21
      // Predicated region
      $region69: #{tpu_custom_call.1} parent=5 // pred_check
        %p878 = pneg %p877
      $region70: #{tpu_custom_call.1} parent=5 // pred_check_branch
        %880 = sbr.rel (%p878) target = $region72
      $region71: #{tpu_custom_call.1} parent=5 // pred_region
        %s881 = ssub.s32 %s21, 2
        // Predicated region
        $region73: #{tpu_custom_call.1} parent=71 // pred_check
          %p882 = pneg %p202
        $region74: #{tpu_custom_call.1} parent=71 // pred_check_branch
          %884 = sbr.rel (%p882) target = $region76
        $region75: #{tpu_custom_call.1} parent=71 // pred_region
          %s885 = sand.u32 %s187, 1
          %s886 = scalar_lea.sflag [#allocation4], %s885
          %s887 = sand.u32 %s187, 1
          %s888 = smul.addr %s887, 80
          %s889 = scalar_lea.vmem [#allocation10], %s888
          %890 = dma.done %s886, 1280
        $region76: #{tpu_custom_call.1} parent=71 // pred_fallthru
          _
      $region72: #{tpu_custom_call.1} parent=5 // pred_fallthru
        _
    $region6: #{tpu_custom_call.1} parent=1 // loop_footer
      %s25 = sadd.s32 1, %s21
    $region7: #{tpu_custom_call.1} parent=1 // loop_footer_branch
      %20 = sbr.rel target = $region3
    $region8: #{tpu_custom_call.1} parent=1 // loop_exit
      _
    %891 = vsyncpa [#allocation3], 1
    %s892 = scalar_lea.sflag [#allocation3], 1
    %893 = vsyncpa %s892, 1
    %894 = vsyncpa [#allocation6], 1
    %895 = vsyncpa [#allocation9], 1
    %896 = vsyncpa [#allocation4], 1
    %s897 = scalar_lea.sflag [#allocation4], 1
    %898 = vsyncpa %s897, 1

</llo_original>
